<compile_context>
chip_gen: v6e
topology: v6e:2x2x1
jax: 0.10.0
libtpu: 0.0.40
codegen_flags: <defaults>
</compile_context>

<pallas_src>
import jax
import jax.numpy as jnp
from jax import lax
from jax.experimental import pallas as pl
from jax.experimental.pallas import tpu as pltpu


def _round_up(x, m):
    return ((x + m - 1) // m) * m


def _conv_block_kernel(x_ref, w_ref, bias_ref, alpha_ref, o_ref):
    # x_ref: (1, K, TS)   w_ref: (OC, K)   bias/alpha: (OC, 1)   o_ref: (1, OC, TS)
    y = jnp.dot(w_ref[...], x_ref[0], preferred_element_type=jnp.float32)   # (OC, TS)
    y = y + bias_ref[...]                                    # folded BatchNorm2d (eval)
    o_ref[0] = jnp.where(y > 0.0, y, alpha_ref[...] * y).astype(o_ref.dtype)  # PReLU


def _im2col_nchw(x, kh, kw, stride, padding):
    """Explicit im2col, feature ordering = Cin-major then (kh, kw) (matches OIHW reshape).

    Returns (patches(N, Cin*kh*kw, Ho*Wo), Ho, Wo).  For kh=kw=1, stride=1, padding=0
    this is just a reshape (no data movement / no transpose)."""
    N, C, H, W = x.shape
    sh, sw = stride
    ph, pw = padding
    Ho = (H + 2 * ph - kh) // sh + 1
    Wo = (W + 2 * pw - kw) // sw + 1
    xp = x if (ph == 0 and pw == 0) else jnp.pad(x, ((0, 0), (0, 0), (ph, ph), (pw, pw)))
    cols = []
    for dh in range(kh):
        for dw in range(kw):
            cols.append(lax.slice(
                xp, (0, 0, dh, dw),
                (N, C, dh + (Ho - 1) * sh + 1, dw + (Wo - 1) * sw + 1),
                (1, 1, sh, sw)))
    patches = jnp.stack(cols, axis=2)                 # (N, C, kh*kw, Ho, Wo)
    return patches.reshape(N, C * kh * kw, Ho * Wo), Ho, Wo


def conv_block_forward(x, weight, gamma, beta, running_mean, running_var,
                       prelu_alpha, *, stride=(1, 1), padding=(0, 0), eps=1e-5,
                       compute_dtype=jnp.bfloat16, spatial_tile=1024):
    """x: (N, Cin, H, W) NCHW.  weight: (OC, Cin, kh, kw).  Returns (N, OC, Ho, Wo)."""
    N, Cin, H, W = x.shape
    OC, cin_g, kh, kw = weight.shape
    assert cin_g == Cin  # TODO(synk): grouped conv (groups > 1) not implemented

    x_cols, Ho, Wo = _im2col_nchw(x.astype(jnp.float32), kh, kw, stride, padding)
    K = Cin * kh * kw
    S = Ho * Wo

    # Fold eval-mode BatchNorm2d: scale into the weight matrix, bias kept separate.
    # TODO(synk): training-mode BN (batch statistics) not implemented; uses running stats.
    inv_std = 1.0 / jnp.sqrt(running_var.astype(jnp.float32) + eps)
    scale = gamma.astype(jnp.float32) * inv_std                                # (OC,)
    bias = beta.astype(jnp.float32) - running_mean.astype(jnp.float32) * scale  # (OC,)
    w_mat = weight.reshape(OC, K).astype(jnp.float32) * scale[:, None]         # (OC, K)

    # Lane-dense spatial tiling: pad S up to a multiple of the tile (>= 128 lanes).
    ts = min(spatial_tile, _round_up(S, 128))
    S_pad = _round_up(S, ts)
    if S_pad != S:
        x_cols = jnp.pad(x_cols, ((0, 0), (0, 0), (0, S_pad - S)))

    itemsize = jnp.dtype(compute_dtype).itemsize
    cost = pl.CostEstimate(
        flops=2 * N * S_pad * K * OC,
        transcendentals=0,
        bytes_accessed=(N * K * S_pad * itemsize + OC * K * itemsize
                        + N * OC * S_pad * 4 + 2 * OC * 4))

    out = pl.pallas_call(
        _conv_block_kernel,
        out_shape=jax.ShapeDtypeStruct((N, OC, S_pad), jnp.float32),
        grid=(N, S_pad // ts),
        in_specs=[
            pl.BlockSpec((1, K, ts), lambda n, s: (n, 0, s)),   # activation tile
            pl.BlockSpec((OC, K), lambda n, s: (0, 0)),         # BN-folded weight (resident)
            pl.BlockSpec((OC, 1), lambda n, s: (0, 0)),         # BN bias
            pl.BlockSpec((OC, 1), lambda n, s: (0, 0)),         # PReLU alpha
        ],
        out_specs=pl.BlockSpec((1, OC, ts), lambda n, s: (n, 0, s)),
        compiler_params=pltpu.CompilerParams(
            dimension_semantics=("parallel", "parallel"),
            vmem_limit_bytes=32 * 1024 * 1024),
        cost_estimate=cost,
    )(x_cols.astype(compute_dtype), w_mat.astype(compute_dtype),
      bias[:, None], prelu_alpha.astype(jnp.float32)[:, None])

    return out[:, :, :S].reshape(N, OC, Ho, Wo)


def _reference_forward(x, weight, gamma, beta, rm, rv, alpha, *,
                       stride=(1, 1), padding=(0, 0), eps=1e-5):
    y = lax.conv_general_dilated(
        x.astype(jnp.float32), weight.astype(jnp.float32), stride,
        [(padding[0], padding[0]), (padding[1], padding[1])],
        dimension_numbers=("NCHW", "OIHW", "NCHW"))
    scale = gamma / jnp.sqrt(rv + eps)
    shift = beta - rm * scale
    y = y * scale[None, :, None, None] + shift[None, :, None, None]
    return jnp.where(y > 0, y, alpha[None, :, None, None] * y)


if __name__ == "__main__":
    key = jax.random.PRNGKey(0)
    k_x, k_w1, k_w3, k_g, k_b, k_m, k_v = jax.random.split(key, 7)

    N, Cin, H, W = 2, 4, 16, 16
    OC = 8

    x = jax.random.normal(k_x, (N, Cin, H, W), dtype=jnp.float32)
    gamma = 1.0 + 0.1 * jax.random.normal(k_g, (OC,), dtype=jnp.float32)
    beta = 0.1 * jax.random.normal(k_b, (OC,), dtype=jnp.float32)
    running_mean = 0.1 * jax.random.normal(k_m, (OC,), dtype=jnp.float32)
    running_var = 0.5 + jax.random.uniform(k_v, (OC,), dtype=jnp.float32)
    prelu_alpha = 0.25 * jnp.ones((OC,), dtype=jnp.float32)  # PReLU default init

    # --- Conv_block default config: 1x1 conv, stride 1, no padding (bf16 MXU path). ---
    w1 = 0.1 * jax.random.normal(k_w1, (OC, Cin, 1, 1), dtype=jnp.float32)
    out1 = jax.block_until_ready(conv_block_forward(
        x, w1, gamma, beta, running_mean, running_var, prelu_alpha))
    ref1 = _reference_forward(x, w1, gamma, beta, running_mean, running_var, prelu_alpha)
    assert out1.shape == (N, OC, H, W)
    assert jnp.allclose(out1, ref1, rtol=3e-2, atol=3e-2)   # bf16 operand tolerance

    # --- General path check: 3x3 conv, stride 2, padding 1 (f32 operands, tight tol). ---
    w3 = 0.1 * jax.random.normal(k_w3, (OC, Cin, 3, 3), dtype=jnp.float32)
    out3 = jax.block_until_ready(conv_block_forward(
        x, w3, gamma, beta, running_mean, running_var, prelu_alpha,
        stride=(2, 2), padding=(1, 1), compute_dtype=jnp.float32))
    ref3 = _reference_forward(x, w3, gamma, beta, running_mean, running_var, prelu_alpha,
                              stride=(2, 2), padding=(1, 1))
    assert out3.shape == ref3.shape == (N, OC, 8, 8)
    assert jnp.allclose(out3, ref3, rtol=1e-3, atol=1e-3)

    print("KERNEL_OK")
</pallas_src>

<mosaic_0001>
module attributes {stable_mosaic.version = 11 : i64} {
  func.func @_conv_block_kernel(%arg0: i32, %arg1: i32, %arg2: memref<1x4x256xbf16, #tpu.memory_space<vmem>>, %arg3: memref<8x4xbf16, #tpu.memory_space<vmem>>, %arg4: memref<8x1xf32, #tpu.memory_space<vmem>>, %arg5: memref<8x1xf32, #tpu.memory_space<vmem>>, %arg6: memref<1x8x256xf32, #tpu.memory_space<vmem>>) attributes {dimension_semantics = [#tpu.dimension_semantics<parallel>, #tpu.dimension_semantics<parallel>], iteration_bounds = array<i64: 2, 1>, scalar_prefetch = 0 : i64, scratch_operands = 0 : i64, tpu.core_type = #tpu.core_type<tc>, window_params = [{transform_indices = @transform_0, window_bounds = array<i64: 1, 4, 256>}, {pipeline_mode = #tpu.pipeline_mode<synchronous>, transform_indices = @transform_1, window_bounds = array<i64: 8, 4>}, {pipeline_mode = #tpu.pipeline_mode<synchronous>, transform_indices = @transform_2, window_bounds = array<i64: 8, 1>}, {pipeline_mode = #tpu.pipeline_mode<synchronous>, transform_indices = @transform_3, window_bounds = array<i64: 8, 1>}, {transform_indices = @transform_4, window_bounds = array<i64: 1, 8, 256>}]} {
    %c0 = arith.constant 0 : index
    %c0_0 = arith.constant 0 : index
    %0 = vector.load %arg3[%c0, %c0_0] : memref<8x4xbf16, #tpu.memory_space<vmem>>, vector<8x4xbf16>
    %c0_1 = arith.constant 0 : index
    %c0_2 = arith.constant 0 : index
    %c0_3 = arith.constant 0 : index
    %1 = vector.load %arg2[%c0_1, %c0_2, %c0_3] : memref<1x4x256xbf16, #tpu.memory_space<vmem>>, vector<1x4x256xbf16>
    %2 = vector.shape_cast %1 : vector<1x4x256xbf16> to vector<4x256xbf16>
    %cst = arith.constant dense<0.000000e+00> : vector<8x256xf32>
    %3 = tpu.matmul %0, %2, %cst {dimension_numbers = #tpu.dot_dimension_numbers<[1], [0], [0], [1], [0, 0, 1, 1], [], []>} : vector<8x4xbf16>, vector<4x256xbf16>, vector<8x256xf32> -> vector<8x256xf32>
    %c0_4 = arith.constant 0 : index
    %c0_5 = arith.constant 0 : index
    %4 = vector.load %arg4[%c0_4, %c0_5] : memref<8x1xf32, #tpu.memory_space<vmem>>, vector<8x1xf32>
    %5 = vector.broadcast %4 : vector<8x1xf32> to vector<8x256xf32>
    %6 = arith.addf %3, %5 : vector<8x256xf32>
    %cst_6 = arith.constant 0.000000e+00 : f32
    %7 = vector.broadcast %cst_6 : f32 to vector<8x256xf32>
    %8 = arith.cmpf ogt, %6, %7 : vector<8x256xf32>
    %c0_7 = arith.constant 0 : index
    %c0_8 = arith.constant 0 : index
    %9 = vector.load %arg5[%c0_7, %c0_8] : memref<8x1xf32, #tpu.memory_space<vmem>>, vector<8x1xf32>
    %10 = vector.broadcast %9 : vector<8x1xf32> to vector<8x256xf32>
    %11 = arith.mulf %10, %6 : vector<8x256xf32>
    %12 = arith.select %8, %6, %11 : vector<8x256xi1>, vector<8x256xf32>
    %c0_9 = arith.constant 0 : index
    %c0_10 = arith.constant 0 : index
    %c0_11 = arith.constant 0 : index
    %13 = vector.load %arg6[%c0_9, %c0_10, %c0_11] : memref<1x8x256xf32, #tpu.memory_space<vmem>>, vector<1x8x256xf32>
    %14 = vector.shape_cast %13 : vector<1x8x256xf32> to vector<8x256xf32>
    %15 = vector.shape_cast %12 : vector<8x256xf32> to vector<1x8x256xf32>
    tpu.vector_store %arg6[%c0_9, %c0_10, %c0_11], %15 {strides = array<i32>} : memref<1x8x256xf32, #tpu.memory_space<vmem>>, vector<1x8x256xf32>,
    return
  }
  func.func @transform_0(%arg0: i32, %arg1: i32) -> (i32, i32, i32) {
    %c0_i32 = arith.constant 0 : i32
    %c0_i32_0 = arith.constant 0 : i32
    return %arg0, %c0_i32, %arg1 : i32, i32, i32
  }
  func.func @transform_1(%arg0: i32, %arg1: i32) -> (i32, i32) {
    %c0_i32 = arith.constant 0 : i32
    %c0_i32_0 = arith.constant 0 : i32
    %c0_i32_1 = arith.constant 0 : i32
    return %c0_i32, %c0_i32_0 : i32, i32
  }
  func.func @transform_2(%arg0: i32, %arg1: i32) -> (i32, i32) {
    %c0_i32 = arith.constant 0 : i32
    %c0_i32_0 = arith.constant 0 : i32
    %c0_i32_1 = arith.constant 0 : i32
    return %c0_i32, %c0_i32_0 : i32, i32
  }
  func.func @transform_3(%arg0: i32, %arg1: i32) -> (i32, i32) {
    %c0_i32 = arith.constant 0 : i32
    %c0_i32_0 = arith.constant 0 : i32
    %c0_i32_1 = arith.constant 0 : i32
    return %c0_i32, %c0_i32_0 : i32, i32
  }
  func.func @transform_4(%arg0: i32, %arg1: i32) -> (i32, i32, i32) {
    %c0_i32 = arith.constant 0 : i32
    %c0_i32_0 = arith.constant 0 : i32
    return %arg0, %c0_i32, %arg1 : i32, i32, i32
  }
}

</mosaic_0001>

<llo_original>
// kernel: tpu_custom_call.1
$region0: #{tpu_custom_call.1}
  #allocation0 [shape = 'u32[]', space=smem, size = 0x4, offset = 0x4, fixed_abs, tag = 'smem constant byte address 0x4 - core index']
  #allocation1 [shape = 'u32[144,128]{1,0:T(1,128)}', space=vmem, size = 0x12000, scoped, tag = 'internal scratch']
  %s0 = inlined_call_operand.vmem [shape: bf16[2,4,256], index: 0, kind: input, shape index: {}]
  %s1 = inlined_call_operand.vmem [shape: bf16[8,4], index: 1, kind: input, shape index: {}]
  %s2 = inlined_call_operand.vmem [shape: f32[8,1], index: 2, kind: input, shape index: {}]
  %s3 = inlined_call_operand.vmem [shape: f32[8,1], index: 3, kind: input, shape index: {}]
  %s4 = inlined_call_operand.hbm [shape: f32[2,8,256], index: 4, kind: output, shape index: {}]
  %s5 = sld [smem:[#allocation0]]
  $region49: #{tpu_custom_call.1} parent=0
    _
  %s7 = ssub.s32 1, %s5
  %s8 = scalar_select 0, %s7, %s5
  $region1: #{tpu_custom_call.1} parent=0
    #allocation2 [shape = 'u8[16384]{0}', space=vmem, size = 0x4000, scoped, tag = 'output window, operand 0']
    #allocation3 [shape = 's32[2]{0}', space=sflag, size = 0x8, scoped, tag = 'scoped memory for tpu_custom_call.1']
    %9 = vsyncpa [#allocation3], 0
    %s10 = scalar_lea.sflag [#allocation3], 1
    %11 = vsyncpa %s10, 0
    loop: start=0, step=1, limit=4
    $region2: #{tpu_custom_call.1} parent=1 // loop_pre_header
      _
    $region3: #{tpu_custom_call.1} parent=1 // loop_header
      %s13 = sphi 0, %s17
      %p14 = scmp.ge.s32.totalorder %s13, 4
      %s20 = sphi 0, %s32
      %s21 = sphi 0, %s28
      %s22 = sphi 0, %s20
      %s23 = sphi 0, %s21
      %s24 = sphi 0, %s22
      %s25 = sphi 0, %s23
      %s37 = sphi 0, %s39
      %s40 = sphi 0, %s37
      %s41 = sphi 0, %s40
      %s57 = sphi 0, %s41
      %s61 = sphi 0, %s61
      %s63 = sphi 0, %s61
      %s64 = sphi 0, %s63
      %s78 = sphi 0, %s64
      %s82 = sphi 0, %s82
      %s84 = sphi 0, %s82
      %s85 = sphi 0, %s84
      %s99 = sphi 0, %s85
      %s103 = sphi 0, %s103
      %s105 = sphi 0, %s103
      %s106 = sphi 0, %s105
      %s120 = sphi 0, %s106
      %s128 = sphi 0, %s130
      %s131 = sphi 0, %s128
      %s132 = sphi 0, %s131
      %s148 = sphi 0, %s132
    $region4: #{tpu_custom_call.1} parent=1 // loop_header_branch
      %16 = sbr.rel (%p14) target = $region8
    $region5: #{tpu_custom_call.1} parent=1 // loop_body
      %s18 = ssub.s32 %s13, 1
      %s19 = ssub.s32 %s13, 2
      %s26 = sadd.s32 1, %s21
      %p27 = scmp.ge.s32.totalorder %s26, 1
      %s28 = scalar_select %p27, 0, %s26
      %s29 = sadd.s32 1, %s20
      %s30 = scalar_select %p27, %s29, %s20
      %p31 = scmp.ge.s32.totalorder %s30, 2
      %s32 = scalar_select %p31, 0, %s30
      %s33 = ssub.s32 %s20, %s32
      %s34 = ssub.s32 %s21, %s28
      %s35 = sor.u32 %s33, %s34
      %p36 = scmp.eq.s32.totalorder %s35, 0
      %s38 = sadd.s32 %s37, 1
      %s39 = scalar_select %p36, %s37, %s38
      %p42 = pneg %p36
      %p43 = scmp.eq.s32.totalorder %s13, 1
      %p44 = por %p42, %p43
      %p45 = scmp.ne.s32.totalorder %s37, %s40
      %p46 = scmp.eq.s32.totalorder %s13, 0
      %p47 = por %p45, %p46
      %p48 = scmp.ne.s32.totalorder %s37, %s40
      %p49 = scmp.eq.s32.totalorder %s18, 1
      %p50 = por %p48, %p49
      %p51 = scmp.ne.s32.totalorder %s40, %s41
      %p52 = scmp.eq.s32.totalorder %s18, 0
      %p53 = por %p51, %p52
      %p54 = scmp.ne.s32.totalorder %s40, %s41
      %p55 = scmp.eq.s32.totalorder %s19, 1
      %p56 = por %p54, %p55
      %p58 = scmp.ne.s32.totalorder %s41, %s57
      %p59 = scmp.eq.s32.totalorder %s19, 0
      %p60 = por %p58, %p59
      %s62 = sadd.s32 %s61, 1
      %p65 = scmp.eq.s32.totalorder %s13, 1
      %p66 = scmp.ne.s32.totalorder %s61, %s63
      %p67 = scmp.eq.s32.totalorder %s13, 0
      %p68 = por %p66, %p67
      %p69 = scmp.ne.s32.totalorder %s61, %s63
      %p70 = scmp.eq.s32.totalorder %s18, 1
      %p71 = por %p69, %p70
      %p72 = scmp.ne.s32.totalorder %s63, %s64
      %p73 = scmp.eq.s32.totalorder %s18, 0
      %p74 = por %p72, %p73
      %p75 = scmp.ne.s32.totalorder %s63, %s64
      %p76 = scmp.eq.s32.totalorder %s19, 1
      %p77 = por %p75, %p76
      %p79 = scmp.ne.s32.totalorder %s64, %s78
      %p80 = scmp.eq.s32.totalorder %s19, 0
      %p81 = por %p79, %p80
      %s83 = sadd.s32 %s82, 1
      %p86 = scmp.eq.s32.totalorder %s13, 1
      %p87 = scmp.ne.s32.totalorder %s82, %s84
      %p88 = scmp.eq.s32.totalorder %s13, 0
      %p89 = por %p87, %p88
      %p90 = scmp.ne.s32.totalorder %s82, %s84
      %p91 = scmp.eq.s32.totalorder %s18, 1
      %p92 = por %p90, %p91
      %p93 = scmp.ne.s32.totalorder %s84, %s85
      %p94 = scmp.eq.s32.totalorder %s18, 0
      %p95 = por %p93, %p94
      %p96 = scmp.ne.s32.totalorder %s84, %s85
      %p97 = scmp.eq.s32.totalorder %s19, 1
      %p98 = por %p96, %p97
      %p100 = scmp.ne.s32.totalorder %s85, %s99
      %p101 = scmp.eq.s32.totalorder %s19, 0
      %p102 = por %p100, %p101
      %s104 = sadd.s32 %s103, 1
      %p107 = scmp.eq.s32.totalorder %s13, 1
      %p108 = scmp.ne.s32.totalorder %s103, %s105
      %p109 = scmp.eq.s32.totalorder %s13, 0
      %p110 = por %p108, %p109
      %p111 = scmp.ne.s32.totalorder %s103, %s105
      %p112 = scmp.eq.s32.totalorder %s18, 1
      %p113 = por %p111, %p112
      %p114 = scmp.ne.s32.totalorder %s105, %s106
      %p115 = scmp.eq.s32.totalorder %s18, 0
      %p116 = por %p114, %p115
      %p117 = scmp.ne.s32.totalorder %s105, %s106
      %p118 = scmp.eq.s32.totalorder %s19, 1
      %p119 = por %p117, %p118
      %p121 = scmp.ne.s32.totalorder %s106, %s120
      %p122 = scmp.eq.s32.totalorder %s19, 0
      %p123 = por %p121, %p122
      %s124 = ssub.s32 %s20, %s32
      %s125 = ssub.s32 %s21, %s28
      %s126 = sor.u32 %s124, %s125
      %p127 = scmp.eq.s32.totalorder %s126, 0
      %s129 = sadd.s32 %s128, 1
      %s130 = scalar_select %p127, %s128, %s129
      %p133 = pneg %p127
      %p134 = scmp.eq.s32.totalorder %s13, 1
      %p135 = por %p133, %p134
      %p136 = scmp.ne.s32.totalorder %s128, %s131
      %p137 = scmp.eq.s32.totalorder %s13, 0
      %p138 = por %p136, %p137
      %p139 = scmp.ne.s32.totalorder %s128, %s131
      %p140 = scmp.eq.s32.totalorder %s18, 1
      %p141 = por %p139, %p140
      %p142 = scmp.ne.s32.totalorder %s131, %s132
      %p143 = scmp.eq.s32.totalorder %s18, 0
      %p144 = por %p142, %p143
      %p145 = scmp.ne.s32.totalorder %s131, %s132
      %p146 = scmp.eq.s32.totalorder %s19, 1
      %p147 = por %p145, %p146
      %p149 = scmp.ne.s32.totalorder %s132, %s148
      %p150 = scmp.eq.s32.totalorder %s19, 0
      %p151 = por %p149, %p150
      %p152 = scmp.le.s32.totalorder 1, %s13
      %p153 = scmp.lt.s32.totalorder %s13, 3
      %p154 = pnand %p152, %p153
      %p155 = pneg %p154
      // Predicated region
      $region9: #{tpu_custom_call.1} parent=5 // pred_check
        _
      $region10: #{tpu_custom_call.1} parent=5 // pred_check_branch
        %157 = sbr.rel (%p154) target = $region12
      $region11: #{tpu_custom_call.1} parent=5 // pred_region
        %s158 = ssub.s32 %s13, 1
        // Predicated region
        $region13: #{tpu_custom_call.1} parent=11 // pred_check
          %p159 = pneg %p74
        $region14: #{tpu_custom_call.1} parent=11 // pred_check_branch
          %161 = sbr.rel (%p159) target = $region16
        $region15: #{tpu_custom_call.1} parent=11 // pred_region
          _
        $region16: #{tpu_custom_call.1} parent=11 // pred_fallthru
          _
        // Predicated region
        $region17: #{tpu_custom_call.1} parent=11 // pred_check
          %p162 = pneg %p95
        $region18: #{tpu_custom_call.1} parent=11 // pred_check_branch
          %164 = sbr.rel (%p162) target = $region20
        $region19: #{tpu_custom_call.1} parent=11 // pred_region
          _
        $region20: #{tpu_custom_call.1} parent=11 // pred_fallthru
          _
        // Predicated region
        $region21: #{tpu_custom_call.1} parent=11 // pred_check
          %p165 = pneg %p116
        $region22: #{tpu_custom_call.1} parent=11 // pred_check_branch
          %167 = sbr.rel (%p165) target = $region24
        $region23: #{tpu_custom_call.1} parent=11 // pred_region
          _
        $region24: #{tpu_custom_call.1} parent=11 // pred_fallthru
          _
      $region12: #{tpu_custom_call.1} parent=5 // pred_fallthru
        _
      %p168 = scmp.lt.s32.totalorder %s13, 2
      // Predicated region
      $region25: #{tpu_custom_call.1} parent=5 // pred_check
        %p169 = pneg %p168
      $region26: #{tpu_custom_call.1} parent=5 // pred_check_branch
        %171 = sbr.rel (%p169) target = $region28
      $region27: #{tpu_custom_call.1} parent=5 // pred_region
        // Predicated region
        $region29: #{tpu_custom_call.1} parent=27 // pred_check
          %p172 = pneg %p47
        $region30: #{tpu_custom_call.1} parent=27 // pred_check_branch
          %174 = sbr.rel (%p172) target = $region32
        $region31: #{tpu_custom_call.1} parent=27 // pred_region
          %s175 = smul.u32 2, %s21
          %p176 = scmp.lt.s32.totalorder %s20, 1
          %s177 = scalar_select %p176, %s20, 1
          %p178 = scmp.lt.s32.totalorder %s175, 1
          %s179 = scalar_select %p178, %s175, 1
          %s180 = smul.addr %s177, 2
          %s181 = sadd.s32 %s179, %s180
          %s182 = smul.addr %s181, 2
          %s183 = scalar_lea.vmem %s0, %s182
          %s184 = smul.u32 2, %s21
        $region32: #{tpu_custom_call.1} parent=27 // pred_fallthru
          _
      $region28: #{tpu_custom_call.1} parent=5 // pred_fallthru
        _
      %p185 = scmp.le.s32.totalorder 1, %s13
      %p186 = scmp.lt.s32.totalorder %s13, 3
      %p187 = pnand %p185, %p186
      %p188 = pneg %p187
      // Predicated region
      $region33: #{tpu_custom_call.1} parent=5 // pred_check
        _
      $region34: #{tpu_custom_call.1} parent=5 // pred_check_branch
        %190 = sbr.rel (%p187) target = $region36
      $region35: #{tpu_custom_call.1} parent=5 // pred_region
        %s191 = ssub.s32 %s13, 1
        %s192 = smul.u32 2, %s23
        %p193 = scmp.lt.s32.totalorder %s22, 1
        %s194 = scalar_select %p193, %s22, 1
        %p195 = scmp.lt.s32.totalorder %s192, 1
        %s196 = scalar_select %p195, %s192, 1
        %s197 = smul.addr %s194, 2
        %s198 = sadd.s32 %s196, %s197
        %s199 = smul.addr %s198, 2
        %s200 = scalar_lea.vmem %s0, %s199
        %p201 = pneg %p53
        %p202 = pneg %p50
        %p203 = pneg %p74
        %p204 = pneg %p71
        %p205 = pneg %p95
        %p206 = pneg %p92
        %p207 = pneg %p116
        %p208 = pneg %p113
        %p209 = pneg %p144
        %p210 = pneg %p141
        %s211 = sand.u32 %s131, 1
        %s212 = scalar_lea.sflag [#allocation3], %s211
        %s213 = sand.u32 %s131, 1
        %s214 = smul.addr %s213, 16
        %s215 = scalar_lea.vmem [#allocation2], %s214
        %s216 = smul.u32 2, %s23
        %p217 = scmp.lt.s32.totalorder %s22, 1
        %s218 = scalar_select %p217, %s22, 1
        %p219 = scmp.lt.s32.totalorder %s216, 1
        %s220 = scalar_select %p219, %s216, 1
        %s221 = smul.addr %s218, 2
        %s222 = sadd.s32 %s220, %s221
        %s223 = smul.addr %s222, 2
        %s224 = scalar_lea.vmem %s0, %s223
        %s225 = smul.u32 2, %s23
        %s226 = smul.u32 2, %s23
        %v228 = vld [vmem:[%s1] sm:$0xf]
        %v229 = vld [vmem:[%s224] sm:$0xf]
        %v230 = vld [vmem:[%s2] sm:$0xff]
        %232 = vset.pattern.permute.xlu0 0
        %233 = vperm.xlu0 %232, %v230
        %v234 = vpop.permute.xlu0 %233
        %v238 = vunpack.c.l.s4 1983009808
        %v239 = vunpack.c.0.s8 %v238
        %v240 = vlaneseq
        %v241 = vshrl.u32 %v240, 7
        %v242 = vsub.s32 %v239, %v241
        %v243 = vrot.slane %v229, %v242
        %v244 = vcombine.high %v243, %v243
        %vm245 = vcmask 31744
        %v247 = vsel %vm245, %v228, 0
        %vm249 = vcmask 1041408
        %v251 = vsel %vm249, %v243, 0
        %v254 = vsel %vm249, %v244, 0
        %256 = vmatprep.subr.bf16.mxu0 0
        %257 = vmatpush1.bf16.msra.mxu0 0
        %258 = vmatprep.subr.bf16.mxu0 0
        %259 = vmatpush1.bf16.msra.mxu0 0
        %260 = vmatprep.subr.bf16.mxu0 0
        %261 = vmatpush1.bf16.msra.mxu0 0
        %262 = vmatprep.subr.bf16.mxu0 0
        %263 = vmatpush1.bf16.msra.mxu0 0
        %264 = vmatprep.subr.bf16.mxu0 0
        %265 = vmatpush1.bf16.msra.mxu0 0
        %266 = vmatprep.subr.bf16.mxu0 0
        %267 = vmatpush1.bf16.msra.mxu0 0
        %268 = vmatprep.subr.bf16.mxu0 0
        %269 = vmatpush1.bf16.msra.mxu0 0
        %270 = vmatprep.subr.bf16.mxu0 %v254
        %271 = vmatpush1.bf16.msra.mxu0 %v251
        %272 = vmatprep.subr.bf16.mxu0 0
        %273 = vmatpush2.bf16.msra.mxu0 0
        %274 = vmatprep.subr.bf16.mxu0 0
        %275 = vmatpush2.bf16.msra.mxu0 0
        %276 = vmatprep.subr.bf16.mxu0 0
        %277 = vmatpush2.bf16.msra.mxu0 0
        %278 = vmatprep.subr.bf16.mxu0 0
        %279 = vmatpush2.bf16.msra.mxu0 0
        %280 = vmatprep.subr.bf16.mxu0 0
        %281 = vmatpush2.bf16.msra.mxu0 0
        %282 = vmatprep.subr.bf16.mxu0 0
        %283 = vmatpush2.bf16.msra.mxu0 0
        %284 = vmatprep.subr.bf16.mxu0 0
        %285 = vmatpush2.bf16.msra.mxu0 0
        %286 = vmatprep.subr.bf16.mxu0 0
        %287 = vmatpush2.bf16.msra.mxu0 0
        %288 = vmatprep.mubr.bf16.mxu0 0
        %289 = vmatmul.mubr.bf16.gmra.mxu0 %v247
        %v290 = vpop.f32.mrf.mxu0
        %v291 = vadd.f32 %v234, %v290
        %v292 = vpop.f32.mrf.mxu0
        %v293 = vadd.f32 %v234, %v292
        %v294 = vpop.f32.mrf.mxu0
        %v295 = vpop.f32.mrf.mxu0
        %296 = vdwg.mxu0
        %vm297 = vcmp.gt.f32.partialorder %v291, 0.0
        %vm298 = vcmp.gt.f32.partialorder %v293, 0.0
        %v299 = vld [vmem:[%s3] sm:$0xff]
        %301 = vset.pattern.permute.xlu0 0
        %302 = vperm.xlu0 %301, %v299
        %v303 = vpop.permute.xlu0 %302
        %v305 = vmul.f32 %v303, %v291
        %v306 = vmul.f32 %v303, %v293
        %v307 = vsel %vm297, %v291, %v305
        %v308 = vsel %vm298, %v293, %v306
        %309 = vst [vmem:[%s215] sm:$0xff] %v307
        %310 = vst [vmem:[%s215 + $0x8] sm:$0xff] %v308
        %s311 = sand.u32 %s131, 1
        %s312 = scalar_lea.sflag [#allocation3], %s311
        %s313 = sand.u32 %s131, 1
        %s314 = smul.addr %s313, 16
        %s315 = scalar_lea.vmem [#allocation2], %s314
        // Predicated region
        $region37: #{tpu_custom_call.1} parent=35 // pred_check
          %p316 = pneg %p141
        $region38: #{tpu_custom_call.1} parent=35 // pred_check_branch
          %318 = sbr.rel (%p316) target = $region40
        $region39: #{tpu_custom_call.1} parent=35 // pred_region
          %s319 = smul.u32 2, %s23
          %s321 = ssub.s32 256, 256
          %322 = vsyncadd %s312, %s321
          %s323 = smul.addr %s22, 2
          %s324 = sadd.s32 %s319, %s323
          %s325 = smul.addr %s324, 128
          %s326 = scalar_lea.hbm %s4, %s325
          %s328 = sshll.u32 %s315, 4
          %s329 = int_to_ptr.vmem [resolvable:$true] %s328
          %331 = dma.vmem_to_hbm [thread:$0]  %s329, 256, %s326, %s312
        $region40: #{tpu_custom_call.1} parent=35 // pred_fallthru
          _
      $region36: #{tpu_custom_call.1} parent=5 // pred_fallthru
        _
      %p332 = scmp.le.s32.totalorder 2, %s13
      // Predicated region
      $region41: #{tpu_custom_call.1} parent=5 // pred_check
        %p333 = pneg %p332
      $region42: #{tpu_custom_call.1} parent=5 // pred_check_branch
        %335 = sbr.rel (%p333) target = $region44
      $region43: #{tpu_custom_call.1} parent=5 // pred_region
        %s336 = ssub.s32 %s13, 2
        // Predicated region
        $region45: #{tpu_custom_call.1} parent=43 // pred_check
          %p337 = pneg %p147
        $region46: #{tpu_custom_call.1} parent=43 // pred_check_branch
          %339 = sbr.rel (%p337) target = $region48
        $region47: #{tpu_custom_call.1} parent=43 // pred_region
          %s340 = sand.u32 %s132, 1
          %s341 = scalar_lea.sflag [#allocation3], %s340
          %s342 = sand.u32 %s132, 1
          %s343 = smul.addr %s342, 16
          %s344 = scalar_lea.vmem [#allocation2], %s343
          %345 = dma.done %s341, 256
        $region48: #{tpu_custom_call.1} parent=43 // pred_fallthru
          _
      $region44: #{tpu_custom_call.1} parent=5 // pred_fallthru
        _
    $region6: #{tpu_custom_call.1} parent=1 // loop_footer
      %s17 = sadd.s32 1, %s13
    $region7: #{tpu_custom_call.1} parent=1 // loop_footer_branch
      %12 = sbr.rel target = $region3
    $region8: #{tpu_custom_call.1} parent=1 // loop_exit
      _
    %346 = vsyncpa [#allocation3], 1
    %s347 = scalar_lea.sflag [#allocation3], 1
    %348 = vsyncpa %s347, 1

</llo_original>
